<compile_context>
chip_gen: v5e
topology: v5e:2x2
jax: 0.10.0
libtpu: 0.0.40
codegen_flags: <defaults>
</compile_context>

<pallas_src>
import functools
import math

import jax
import jax.numpy as jnp
from jax.experimental import pallas as pl
from jax.experimental.pallas import tpu as pltpu


# ============================================================================
# Pallas kernels
# ============================================================================
def _linear_kernel(x_ref, w_ref, b_ref, o_ref, *, activation):
    acc = jnp.dot(x_ref[...], w_ref[...], preferred_element_type=jnp.float32)
    acc = acc + b_ref[...]                       # (1, N) broadcasts over rows
    if activation == "relu":
        acc = jnp.maximum(acc, 0.0)
    o_ref[...] = acc.astype(o_ref.dtype)


def _fused_mha_ln_kernel(xq_ref, xkv_ref, res_ref, pbias_ref,
                         wq_ref, bq_ref, wkv_ref, bkv_ref, wo_ref, bo_ref,
                         g_ref, bln_ref, o_ref, *,
                         head_num, causal, inv_temperature, eps):
    """One batch element per grid step.

    Fuses: Q projection, fused K/V projection, per-head SDPA (mask built in-kernel),
    output projection (folded into the head loop as an accumulation), residual add
    and LayerNorm.  All intermediates stay in VMEM.
    """
    xq = xq_ref[0]                               # (Lq, Cq)  bf16
    xkv = xkv_ref[0]                             # (Lk, Ck)  bf16
    Lq = xq.shape[0]
    Lk = xkv.shape[0]
    Cq = wo_ref.shape[1]
    C = wq_ref.shape[1]
    hd = C // head_num

    # Projections on the MXU: bf16 inputs, f32 accumulation.
    q = jnp.dot(xq, wq_ref[...], preferred_element_type=jnp.float32) + bq_ref[...]
    kv = jnp.dot(xkv, wkv_ref[...], preferred_element_type=jnp.float32) + bkv_ref[...]
    k = kv[:, :C]
    v = kv[:, C:]

    # Additive attention mask built in-kernel (no (B*H, Lq, Lk) bias in HBM).
    bias = jnp.broadcast_to(pbias_ref[0], (Lq, Lk))          # pad-token bias (f32)
    if causal:
        row = jax.lax.broadcasted_iota(jnp.int32, (Lq, Lk), 0)
        col = jax.lax.broadcasted_iota(jnp.int32, (Lq, Lk), 1)
        bias = jnp.where(col > row, -1e30, bias)

    wo = wo_ref[...]                                          # (C, Cq) bf16, resident
    acc = jnp.zeros((Lq, Cq), jnp.float32)
    for h in range(head_num):                                 # unrolled per-head SDPA
        qh = q[:, h * hd:(h + 1) * hd].astype(jnp.bfloat16)
        kh = k[:, h * hd:(h + 1) * hd].astype(jnp.bfloat16)
        vh = v[:, h * hd:(h + 1) * hd].astype(jnp.bfloat16)
        # scores = qh @ kh^T (contract last dims; no explicit transpose op)
        s = jax.lax.dot_general(qh, kh, (((1,), (1,)), ((), ())),
                                preferred_element_type=jnp.float32)
        s = s * inv_temperature + bias
        m = jnp.max(s, axis=-1, keepdims=True)
        p = jnp.exp(s - m)
        p = p * pl.reciprocal(jnp.sum(p, axis=-1, keepdims=True), approx=True)
        pv = jnp.dot(p.astype(jnp.bfloat16), vh, preferred_element_type=jnp.float32)
        # Fold the output projection into the head loop: concat(heads) @ Wo
        # == sum_h head_h @ Wo[h*hd:(h+1)*hd, :]
        acc = acc + jnp.dot(pv.astype(jnp.bfloat16), wo[h * hd:(h + 1) * hd, :],
                            preferred_element_type=jnp.float32)

    y = acc + bo_ref[...] + res_ref[0].astype(jnp.float32)    # residual (f32 math)
    mean = jnp.mean(y, axis=-1, keepdims=True)
    var = jnp.mean((y - mean) ** 2, axis=-1, keepdims=True)
    yhat = (y - mean) * jax.lax.rsqrt(var + eps)
    o_ref[0] = (yhat * g_ref[...] + bln_ref[...]).astype(o_ref.dtype)


def _fused_ffn_ln_kernel(x_ref, w1_ref, b1_ref, w2_ref, b2_ref,
                         g_ref, bln_ref, o_ref, *, eps):
    """relu(relu(x W1 + b1) W2 + b2) + x  ->  LayerNorm.  Row-tiled."""
    x = x_ref[...]                                            # (tm, C) bf16
    h = jnp.dot(x, w1_ref[...], preferred_element_type=jnp.float32) + b1_ref[...]
    h = jnp.maximum(h, 0.0)
    y = jnp.dot(h.astype(jnp.bfloat16), w2_ref[...],
                preferred_element_type=jnp.float32) + b2_ref[...]
    y = jnp.maximum(y, 0.0)          # reference Feedforward has a trailing ReLU
    y = y + x.astype(jnp.float32)                             # residual
    mean = jnp.mean(y, axis=-1, keepdims=True)
    var = jnp.mean((y - mean) ** 2, axis=-1, keepdims=True)
    yhat = (y - mean) * jax.lax.rsqrt(var + eps)
    o_ref[...] = (yhat * g_ref[...] + bln_ref[...]).astype(o_ref.dtype)


# ============================================================================
# Pallas wrappers
# ============================================================================
def linear(x, w, b, *, activation="none", out_dtype=jnp.float32, block_rows=512):
    """x:(M,K) @ w:(K,N) + b.  bf16 MXU matmul, f32 accumulate, row-tiled grid,
    K padded to a multiple of 8 and N padded to a multiple of 128 (sliced back)."""
    M, K = x.shape
    N = w.shape[1]
    Kp = -(-K // 8) * 8
    Np = -(-N // 128) * 128
    xb = x.astype(jnp.bfloat16)
    wb = w.astype(jnp.bfloat16)
    bb = b.astype(jnp.float32)
    if Kp != K:
        xb = jnp.pad(xb, ((0, 0), (0, Kp - K)))
        wb = jnp.pad(wb, ((0, Kp - K), (0, 0)))
    if Np != N:
        wb = jnp.pad(wb, ((0, 0), (0, Np - N)))
        bb = jnp.pad(bb, (0, Np - N))
    tm = M if M <= block_rows else block_rows
    out = pl.pallas_call(
        functools.partial(_linear_kernel, activation=activation),
        grid=(pl.cdiv(M, tm),),
        in_specs=[
            pl.BlockSpec((tm, Kp), lambda i: (i, 0)),
            pl.BlockSpec((Kp, Np), lambda i: (0, 0)),     # weights stay resident
            pl.BlockSpec((1, Np), lambda i: (0, 0)),
        ],
        out_specs=pl.BlockSpec((tm, Np), lambda i: (i, 0)),
        out_shape=jax.ShapeDtypeStruct((M, Np), out_dtype),
        compiler_params=pltpu.CompilerParams(dimension_semantics=("parallel",)),
    )(xb, wb, bb.reshape(1, Np))
    return out[:, :N] if Np != N else out


def fused_mha_ln(xq, xkv, residual, pad_bias, mp, ln_g, ln_b, *, head_num, causal):
    """Fused MultiHeadAttention + residual + LayerNorm.

    xq:(B,Lq,Cq), xkv:(B,Lk,Ck), residual:(B,Lq,Cq), pad_bias:(B,1,Lk) additive f32.
    Returns LayerNorm(MHA(xq, xkv, xkv) + residual) in bf16.
    """
    B, Lq, Cq = xq.shape
    Lk, Ck = xkv.shape[1], xkv.shape[2]
    C = mp["wq"].shape[1]
    inv_t = 1.0 / math.sqrt(float(C))     # temperature = sqrt(head_num*head_dim)
    kernel = functools.partial(_fused_mha_ln_kernel, head_num=head_num, causal=causal,
                               inv_temperature=inv_t, eps=1e-5)
    return pl.pallas_call(
        kernel,
        grid=(B,),
        in_specs=[
            pl.BlockSpec((1, Lq, Cq), lambda i: (i, 0, 0)),
            pl.BlockSpec((1, Lk, Ck), lambda i: (i, 0, 0)),
            pl.BlockSpec((1, Lq, Cq), lambda i: (i, 0, 0)),
            pl.BlockSpec((1, 1, Lk), lambda i: (i, 0, 0)),
            pl.BlockSpec((Cq, C), lambda i: (0, 0)),
            pl.BlockSpec((1, C), lambda i: (0, 0)),
            pl.BlockSpec((Ck, 2 * C), lambda i: (0, 0)),
            pl.BlockSpec((1, 2 * C), lambda i: (0, 0)),
            pl.BlockSpec((C, Cq), lambda i: (0, 0)),
            pl.BlockSpec((1, Cq), lambda i: (0, 0)),
            pl.BlockSpec((1, Cq), lambda i: (0, 0)),
            pl.BlockSpec((1, Cq), lambda i: (0, 0)),
        ],
        out_specs=pl.BlockSpec((1, Lq, Cq), lambda i: (i, 0, 0)),
        out_shape=jax.ShapeDtypeStruct((B, Lq, Cq), jnp.bfloat16),
        compiler_params=pltpu.CompilerParams(dimension_semantics=("parallel",)),
    )(
        xq.astype(jnp.bfloat16), xkv.astype(jnp.bfloat16),
        residual.astype(jnp.bfloat16), pad_bias.astype(jnp.float32),
        mp["wq"].astype(jnp.bfloat16), mp["bq"].reshape(1, C).astype(jnp.float32),
        mp["wkv"].astype(jnp.bfloat16), mp["bkv"].reshape(1, 2 * C).astype(jnp.float32),
        mp["wo"].astype(jnp.bfloat16), mp["bo"].reshape(1, Cq).astype(jnp.float32),
        ln_g.reshape(1, Cq).astype(jnp.float32), ln_b.reshape(1, Cq).astype(jnp.float32),
    )


def fused_ffn_ln(x, fp, ln_g, ln_b, *, block_rows=512):
    """Fused Feedforward + residual + LayerNorm, tiled over rows of (B*L, C)."""
    B, L, C = x.shape
    F = fp["w1"].shape[1]
    M = B * L
    x2 = x.reshape(M, C).astype(jnp.bfloat16)
    tm = M if M <= block_rows else block_rows
    out = pl.pallas_call(
        functools.partial(_fused_ffn_ln_kernel, eps=1e-5),
        grid=(pl.cdiv(M, tm),),
        in_specs=[
            pl.BlockSpec((tm, C), lambda i: (i, 0)),
            pl.BlockSpec((C, F), lambda i: (0, 0)),       # weights resident
            pl.BlockSpec((1, F), lambda i: (0, 0)),
            pl.BlockSpec((F, C), lambda i: (0, 0)),
            pl.BlockSpec((1, C), lambda i: (0, 0)),
            pl.BlockSpec((1, C), lambda i: (0, 0)),
            pl.BlockSpec((1, C), lambda i: (0, 0)),
        ],
        out_specs=pl.BlockSpec((tm, C), lambda i: (i, 0)),
        out_shape=jax.ShapeDtypeStruct((M, C), jnp.bfloat16),
        compiler_params=pltpu.CompilerParams(dimension_semantics=("parallel",)),
    )(
        x2,
        fp["w1"].astype(jnp.bfloat16), fp["b1"].reshape(1, F).astype(jnp.float32),
        fp["w2"].astype(jnp.bfloat16), fp["b2"].reshape(1, C).astype(jnp.float32),
        ln_g.reshape(1, C).astype(jnp.float32), ln_b.reshape(1, C).astype(jnp.float32),
    )
    return out.reshape(B, L, C)


# ----------------------------------------------------------------------------
# Sinusoidal position tables (matches PositionEncoder1D / PositionalEncoding2D)
# ----------------------------------------------------------------------------
def sinusoid_table(channels, max_len):
    pos = jnp.arange(max_len, dtype=jnp.float32)[:, None]
    i = jnp.arange(channels, dtype=jnp.float32)[None, :]
    angle = pos / jnp.power(10000.0, 2.0 * jnp.floor(i / 2.0) / channels)
    idx = jnp.arange(channels)
    return jnp.where((idx % 2 == 0)[None, :], jnp.sin(angle), jnp.cos(angle))


# ============================================================================
# Model forward
# ============================================================================
def encoder_forward(x, params, head_num):
    # x: (B, Cin, H, W), NCHW like PyTorch
    B, Cin, H, W = x.shape
    hidden = params["conv_w"].shape[1]

    # Shallow CNN surrogate: 3x3 stride-2 pad-1 conv via im2col + Pallas matmul.
    # TODO(synk): TimmModel backbone is unspecified in the reference; using a single
    #             3x3/s2 conv to hidden_dim as the shallow feature extractor.
    xp = jnp.pad(x, ((0, 0), (0, 0), (1, 1), (1, 1)))
    Ho, Wo = H // 2, W // 2
    patches = []
    for dh in range(3):
        for dw in range(3):
            patches.append(xp[:, :, dh:dh + 2 * Ho:2, dw:dw + 2 * Wo:2])  # (B,Cin,Ho,Wo)
    patches = jnp.stack(patches, axis=1)                       # (B, 9, Cin, Ho, Wo)
    patches = patches.reshape(B, 9 * Cin, Ho, Wo).transpose(0, 2, 3, 1)
    feat = linear(patches.reshape(B * Ho * Wo, 9 * Cin), params["conv_w"], params["conv_b"])
    fmap = feat.reshape(B, Ho, Wo, hidden)

    # PositionalEncoding2D
    c2 = hidden // 2
    h_pe = linear(sinusoid_table(c2, Ho), params["h_lin_w"], params["h_lin_b"])  # (Ho, c2)
    w_pe = linear(sinusoid_table(c2, Wo), params["w_lin_w"], params["w_lin_b"])  # (Wo, c2)
    pos = jnp.concatenate(
        [jnp.broadcast_to(h_pe[:, None, :], (Ho, Wo, c2)),
         jnp.broadcast_to(w_pe[None, :, :], (Ho, Wo, c2))], axis=-1)             # (Ho,Wo,hidden)
    fmap = fmap + pos[None]

    seq = fmap.reshape(B, Ho * Wo, hidden).astype(jnp.bfloat16)  # == view(b,c,h*w).T
    S = Ho * Wo
    zero_bias = jnp.zeros((B, 1, S), jnp.float32)

    for lp in params["enc_layers"]:
        out = fused_mha_ln(seq, seq, seq, zero_bias, lp["mha"], lp["ln1_g"], lp["ln1_b"],
                           head_num=head_num, causal=False)
        seq = fused_ffn_ln(out, lp["ff"], lp["ln2_g"], lp["ln2_b"])
    return seq


def decoder_forward(src, text, params, head_num, pad_id):
    # src: (B, S, src_dim) bf16, text: (B, L) int32  (teacher-forcing path)
    B, L = text.shape
    S = src.shape[1]
    hidden = params["embed"].shape[1]

    tgt = params["embed"][text] * math.sqrt(hidden)            # embedding * sqrt(hidden)
    tgt = tgt + sinusoid_table(hidden, 500)[:L][None]          # PositionEncoder1D
    tgt = tgt.astype(jnp.bfloat16)

    # Pad-token mask becomes a per-batch additive bias row; the causal triangle is
    # generated inside the attention kernel (no (B, L, L) mask materialized in HBM).
    pad_mask = (text == pad_id)
    pad_mask = pad_mask.at[:, 0].set(False)
    pad_bias = jnp.where(pad_mask, -1e30, 0.0).astype(jnp.float32)[:, None, :]   # (B,1,L)
    zero_bias = jnp.zeros((B, 1, S), jnp.float32)

    for lp in params["dec_layers"]:
        out1 = fused_mha_ln(tgt, tgt, tgt, pad_bias, lp["self_mha"],
                            lp["ln1_g"], lp["ln1_b"], head_num=head_num, causal=True)
        # cross-attention query is the layer input `tgt`, residual is `out1` (as in PyTorch)
        out2 = fused_mha_ln(tgt, src, out1, zero_bias, lp["cross_mha"],
                            lp["ln2_g"], lp["ln2_b"], head_num=head_num, causal=False)
        tgt = fused_ffn_ln(out2, lp["ff"], lp["ln3_g"], lp["ln3_b"])

    num_classes = params["gen_w"].shape[1]
    logits = linear(tgt.reshape(B * L, hidden), params["gen_w"], params["gen_b"],
                    out_dtype=jnp.float32)
    return logits.reshape(B, L, num_classes)


def vim_satrn_forward(image, expected, params, *, enc_heads, dec_heads, pad_id,
                      is_train=True, teacher_forcing_ratio=1.0):
    # TODO(synk): only the teacher-forcing branch (is_train=True, ratio=1.0) is
    #             implemented; the autoregressive greedy-decode branch is host-side
    #             control flow and is not translated.
    enc = encoder_forward(image, params["encoder"], enc_heads)
    dec = decoder_forward(enc, expected[:, :-1], params["decoder"], dec_heads, pad_id)
    return dec


# ============================================================================
# Deterministic parameter init
# ============================================================================
def init_params(key, *, rgb, hidden, enc_filter, enc_layers,
                num_classes, dec_filter, dec_layers):
    keys = list(jax.random.split(key, 512))
    it = iter(keys)

    def lin(din, dout):
        w = (jax.random.normal(next(it), (din, dout), jnp.float32) * 0.02).astype(jnp.bfloat16)
        b = jax.random.normal(next(it), (dout,), jnp.float32) * 0.02
        return w, b

    def mha(q_ch, k_ch):
        wq, bq = lin(q_ch, q_ch)
        wkv, bkv = lin(k_ch, 2 * q_ch)     # fused K/V projection
        wo, bo = lin(q_ch, q_ch)
        return dict(wq=wq, bq=bq, wkv=wkv, bkv=bkv, wo=wo, bo=bo)

    def ffn(dim, filt):
        w1, b1 = lin(dim, filt)
        w2, b2 = lin(filt, dim)
        return dict(w1=w1, b1=b1, w2=w2, b2=b2)

    conv_w, conv_b = lin(rgb * 9, hidden)
    h_lin_w, h_lin_b = lin(hidden // 2, hidden // 2)
    w_lin_w, w_lin_b = lin(hidden // 2, hidden // 2)

    enc_layer_params = []
    for _ in range(enc_layers):
        enc_layer_params.append(dict(
            mha=mha(hidden, hidden),
            ln1_g=jnp.ones((hidden,), jnp.float32), ln1_b=jnp.zeros((hidden,), jnp.float32),
            ff=ffn(hidden, enc_filter),
            ln2_g=jnp.ones((hidden,), jnp.float32), ln2_b=jnp.zeros((hidden,), jnp.float32),
        ))

    embed = jax.random.normal(next(it), (num_classes + 1, hidden), jnp.float32) * 0.02
    dec_layer_params = []
    for _ in range(dec_layers):
        dec_layer_params.append(dict(
            self_mha=mha(hidden, hidden),
            ln1_g=jnp.ones((hidden,), jnp.float32), ln1_b=jnp.zeros((hidden,), jnp.float32),
            cross_mha=mha(hidden, hidden),  # src_dim == encoder hidden_dim
            ln2_g=jnp.ones((hidden,), jnp.float32), ln2_b=jnp.zeros((hidden,), jnp.float32),
            ff=ffn(hidden, dec_filter),
            ln3_g=jnp.ones((hidden,), jnp.float32), ln3_b=jnp.zeros((hidden,), jnp.float32),
        ))
    gen_w, gen_b = lin(hidden, num_classes)

    return dict(
        encoder=dict(conv_w=conv_w, conv_b=conv_b,
                     h_lin_w=h_lin_w, h_lin_b=h_lin_b,
                     w_lin_w=w_lin_w, w_lin_b=w_lin_b,
                     enc_layers=enc_layer_params),
        decoder=dict(embed=embed, dec_layers=dec_layer_params,
                     gen_w=gen_w, gen_b=gen_b),
    )


# ============================================================================
# Main
# ============================================================================
if __name__ == "__main__":
    # Small deterministic config
    B, RGB, H, W = 2, 3, 16, 16
    HIDDEN, ENC_FILTER, DEC_FILTER = 32, 64, 64
    ENC_HEADS, DEC_HEADS = 4, 4
    ENC_LAYERS, DEC_LAYERS = 1, 1
    NUM_CLASSES = 10
    PAD_ID, ST_ID = 0, 1
    SEQ = 9  # expected length -> text length 8

    key = jax.random.PRNGKey(0)
    k_img, k_txt, k_par = jax.random.split(key, 3)

    image = jax.random.normal(k_img, (B, RGB, H, W), jnp.float32)
    expected = jax.random.randint(k_txt, (B, SEQ), 0, NUM_CLASSES + 1, dtype=jnp.int32)
    expected = expected.at[:, 0].set(ST_ID)  # start token, like the decode convention

    params = init_params(
        k_par, rgb=RGB, hidden=HIDDEN, enc_filter=ENC_FILTER, enc_layers=ENC_LAYERS,
        num_classes=NUM_CLASSES, dec_filter=DEC_FILTER, dec_layers=DEC_LAYERS)

    out = vim_satrn_forward(image, expected, params,
                            enc_heads=ENC_HEADS, dec_heads=DEC_HEADS, pad_id=PAD_ID,
                            is_train=True, teacher_forcing_ratio=1.0)
    out = jax.block_until_ready(out)

    assert out.shape == (B, SEQ - 1, NUM_CLASSES), out.shape
    assert bool(jnp.all(jnp.isfinite(out)))
    print("KERNEL_OK")
</pallas_src>

<mosaic_0001>
module attributes {stable_mosaic.version = 11 : i64} {
  func.func @_linear_kernel(%arg0: i32, %arg1: memref<128x32xbf16, #tpu.memory_space<vmem>>, %arg2: memref<32x128xbf16, #tpu.memory_space<vmem>>, %arg3: memref<1x128xf32, #tpu.memory_space<vmem>>, %arg4: memref<128x128xf32, #tpu.memory_space<vmem>>) attributes {dimension_semantics = [#tpu.dimension_semantics<parallel>], iteration_bounds = array<i64: 1>, scalar_prefetch = 0 : i64, scratch_operands = 0 : i64, tpu.core_type = #tpu.core_type<tc>, window_params = [{transform_indices = @transform_0, window_bounds = array<i64: 128, 32>}, {pipeline_mode = #tpu.pipeline_mode<synchronous>, transform_indices = @transform_1, window_bounds = array<i64: 32, 128>}, {pipeline_mode = #tpu.pipeline_mode<synchronous>, transform_indices = @transform_2, window_bounds = array<i64: 1, 128>}, {transform_indices = @transform_3, window_bounds = array<i64: 128, 128>}]} {
    %c0 = arith.constant 0 : index
    %c0_0 = arith.constant 0 : index
    %0 = vector.load %arg1[%c0, %c0_0] : memref<128x32xbf16, #tpu.memory_space<vmem>>, vector<128x32xbf16>
    %c0_1 = arith.constant 0 : index
    %c0_2 = arith.constant 0 : index
    %1 = vector.load %arg2[%c0_1, %c0_2] : memref<32x128xbf16, #tpu.memory_space<vmem>>, vector<32x128xbf16>
    %cst = arith.constant dense<0.000000e+00> : vector<128x128xf32>
    %2 = tpu.matmul %0, %1, %cst {dimension_numbers = #tpu.dot_dimension_numbers<[1], [0], [0], [1], [0, 0, 1, 1], [], []>} : vector<128x32xbf16>, vector<32x128xbf16>, vector<128x128xf32> -> vector<128x128xf32>
    %c0_3 = arith.constant 0 : index
    %c0_4 = arith.constant 0 : index
    %3 = vector.load %arg3[%c0_3, %c0_4] : memref<1x128xf32, #tpu.memory_space<vmem>>, vector<1x128xf32>
    %4 = vector.broadcast %3 : vector<1x128xf32> to vector<128x128xf32>
    %5 = arith.addf %2, %4 : vector<128x128xf32>
    %c0_5 = arith.constant 0 : index
    %c0_6 = arith.constant 0 : index
    %6 = vector.load %arg4[%c0_5, %c0_6] : memref<128x128xf32, #tpu.memory_space<vmem>>, vector<128x128xf32>
    tpu.vector_store %arg4[%c0_5, %c0_6], %5 {strides = array<i32>} : memref<128x128xf32, #tpu.memory_space<vmem>>, vector<128x128xf32>,
    return
  }
  func.func @transform_0(%arg0: i32) -> (i32, i32) {
    %c0_i32 = arith.constant 0 : i32
    %c0_i32_0 = arith.constant 0 : i32
    return %arg0, %c0_i32 : i32, i32
  }
  func.func @transform_1(%arg0: i32) -> (i32, i32) {
    %c0_i32 = arith.constant 0 : i32
    %c0_i32_0 = arith.constant 0 : i32
    %c0_i32_1 = arith.constant 0 : i32
    return %c0_i32, %c0_i32_0 : i32, i32
  }
  func.func @transform_2(%arg0: i32) -> (i32, i32) {
    %c0_i32 = arith.constant 0 : i32
    %c0_i32_0 = arith.constant 0 : i32
    %c0_i32_1 = arith.constant 0 : i32
    return %c0_i32, %c0_i32_0 : i32, i32
  }
  func.func @transform_3(%arg0: i32) -> (i32, i32) {
    %c0_i32 = arith.constant 0 : i32
    %c0_i32_0 = arith.constant 0 : i32
    return %arg0, %c0_i32 : i32, i32
  }
}

</mosaic_0001>

<llo_original>
// kernel: tpu_custom_call.1
$region0: #{tpu_custom_call.1}
  #allocation0 [shape = 'u32[]', space=smem, size = 0x4, offset = 0x4, fixed_abs, tag = 'smem constant byte address 0x4 - core index']
  #allocation1 [shape = 'u32[72,128]{1,0:T(1,128)}', space=vmem, size = 0x9000, scoped, tag = 'internal scratch']
  %s0 = inlined_call_operand.vmem [shape: bf16[128,32], index: 0, kind: input, shape index: {}]
  %s1 = inlined_call_operand.vmem [shape: bf16[32,128], index: 1, kind: input, shape index: {}]
  %s2 = inlined_call_operand.vmem [shape: f32[1,128], index: 2, kind: input, shape index: {}]
  %s3 = inlined_call_operand.hbm [shape: f32[128,128], index: 3, kind: output, shape index: {}]
  %s4 = sld [smem:[#allocation0]]
  $region22: #{tpu_custom_call.1} parent=0
    _
  %s6 = ssub.s32 1, %s4
  %s7 = scalar_select 0, %s6, %s4
  $region1: #{tpu_custom_call.1} parent=0
    #allocation2 [shape = 'u8[65536]{0}', space=vmem, size = 0x10000, scoped, tag = 'output window, operand 0, single buffered']
    #allocation3 [shape = 's32[1]{0}', space=sflag, size = 0x4, scoped, tag = 'scoped memory for tpu_custom_call.1']
    %8 = vsyncpa [#allocation3], 0
    // Predicated region
    $region2: #{tpu_custom_call.1} parent=1 // pred_check
      _
    $region3: #{tpu_custom_call.1} parent=1 // pred_check_branch
      %10 = sbr.rel (0) target = $region5
    $region4: #{tpu_custom_call.1} parent=1 // pred_region
      _
    $region5: #{tpu_custom_call.1} parent=1 // pred_fallthru
      _
    // Predicated region
    $region6: #{tpu_custom_call.1} parent=1 // pred_check
      _
    $region7: #{tpu_custom_call.1} parent=1 // pred_check_branch
      %12 = sbr.rel (0) target = $region9
    $region8: #{tpu_custom_call.1} parent=1 // pred_region
      _
    $region9: #{tpu_custom_call.1} parent=1 // pred_fallthru
      _
    // Predicated region
    $region10: #{tpu_custom_call.1} parent=1 // pred_check
      _
    $region11: #{tpu_custom_call.1} parent=1 // pred_check_branch
      %14 = sbr.rel (0) target = $region13
    $region12: #{tpu_custom_call.1} parent=1 // pred_region
      _
    $region13: #{tpu_custom_call.1} parent=1 // pred_fallthru
      _
    %v16 = vld [vmem:[%s0] sm:$0xf]
    %v17 = vld [vmem:[%s0 + $0x4] sm:$0xf]
    %v18 = vld [vmem:[%s0 + $0x8] sm:$0xf]
    %v19 = vld [vmem:[%s0 + $0xc] sm:$0xf]
    %v20 = vld [vmem:[%s0 + $0x10] sm:$0xf]
    %v21 = vld [vmem:[%s0 + $0x14] sm:$0xf]
    %v22 = vld [vmem:[%s0 + $0x18] sm:$0xf]
    %v23 = vld [vmem:[%s0 + $0x1c] sm:$0xf]
    %v24 = vld [vmem:[%s0 + $0x20] sm:$0xf]
    %v25 = vld [vmem:[%s0 + $0x24] sm:$0xf]
    %v26 = vld [vmem:[%s0 + $0x28] sm:$0xf]
    %v27 = vld [vmem:[%s0 + $0x2c] sm:$0xf]
    %v28 = vld [vmem:[%s0 + $0x30] sm:$0xf]
    %v29 = vld [vmem:[%s0 + $0x34] sm:$0xf]
    %v30 = vld [vmem:[%s0 + $0x38] sm:$0xf]
    %v31 = vld [vmem:[%s0 + $0x3c] sm:$0xf]
    %v32 = vld [vmem:[%s1] sm:$0xf]
    %v33 = vld [vmem:[%s1 + $0x4] sm:$0xf]
    %v34 = vld [vmem:[%s1 + $0x8] sm:$0xf]
    %v35 = vld [vmem:[%s1 + $0xc] sm:$0xf]
    %v36 = vld [vmem:[%s2] sm:$0x1]
    %v38 = vperm.slane %v36, 0
    %v56 = vunpack.c.l.b16 %v16
    %v57 = vunpack.c.l.b16 %v17
    %v58 = vunpack.c.l.b16 %v18
    %v59 = vunpack.c.l.b16 %v19
    %v60 = vunpack.c.l.b16 %v20
    %v61 = vunpack.c.l.b16 %v21
    %v62 = vunpack.c.l.b16 %v22
    %v63 = vunpack.c.l.b16 %v23
    %v64 = vunpack.c.l.b16 %v24
    %v65 = vunpack.c.l.b16 %v25
    %v66 = vunpack.c.l.b16 %v26
    %v67 = vunpack.c.l.b16 %v27
    %v68 = vunpack.c.l.b16 %v28
    %v69 = vunpack.c.l.b16 %v29
    %v70 = vunpack.c.l.b16 %v30
    %v71 = vunpack.c.l.b16 %v31
    %v72 = vpack.c.b16 %v57, %v56
    %v73 = vpack.c.b16 %v59, %v58
    %v74 = vpack.c.b16 %v61, %v60
    %v75 = vpack.c.b16 %v63, %v62
    %v76 = vpack.c.b16 %v65, %v64
    %v77 = vpack.c.b16 %v67, %v66
    %v78 = vpack.c.b16 %v69, %v68
    %v79 = vpack.c.b16 %v71, %v70
    %v84 = vunpack.c.l.b16 %v32
    %v85 = vunpack.c.l.b16 %v33
    %v86 = vunpack.c.l.b16 %v34
    %v87 = vunpack.c.l.b16 %v35
    %v88 = vpack.c.b16 %v85, %v84
    %v89 = vpack.c.b16 %v87, %v86
    %vm92 = vcmask 261120
    %v94 = vsel %vm92, %v72, 0
    %v97 = vsel %vm92, %v73, 0
    %v100 = vsel %vm92, %v74, 0
    %v103 = vsel %vm92, %v75, 0
    %v106 = vsel %vm92, %v76, 0
    %v109 = vsel %vm92, %v77, 0
    %v112 = vsel %vm92, %v78, 0
    %v115 = vsel %vm92, %v79, 0
    %117 = vmatpush.bf16.msra.mxu0 0
    %118 = vmatpush.bf16.msra.mxu0 0
    %119 = vmatpush.bf16.msra.mxu0 0
    %120 = vmatpush.bf16.msra.mxu0 0
    %121 = vmatpush.bf16.msra.mxu0 0
    %122 = vmatpush.bf16.msra.mxu0 0
    %123 = vmatpush.bf16.msra.mxu0 %v89
    %124 = vmatpush.bf16.msra.mxu0 %v88
    %125 = vmatmul.bf16.gmra.mxu0 %v94
    %v126 = vpop.f32.mrf.mxu0
    %v127 = vadd.f32 %v38, %v126
    %v128 = vpop.f32.mrf.mxu0
    %v129 = vadd.f32 %v38, %v128
    %130 = vmatmul.bf16.gmra.mxu0 %v97
    %v131 = vpop.f32.mrf.mxu0
    %v132 = vadd.f32 %v38, %v131
    %v133 = vpop.f32.mrf.mxu0
    %v134 = vadd.f32 %v38, %v133
    %135 = vmatmul.bf16.gmra.mxu0 %v100
    %v136 = vpop.f32.mrf.mxu0
    %v137 = vadd.f32 %v38, %v136
    %v138 = vpop.f32.mrf.mxu0
    %v139 = vadd.f32 %v38, %v138
    %140 = vmatmul.bf16.gmra.mxu0 %v103
    %v141 = vpop.f32.mrf.mxu0
    %v142 = vadd.f32 %v38, %v141
    %v143 = vpop.f32.mrf.mxu0
    %v144 = vadd.f32 %v38, %v143
    %145 = vmatmul.bf16.gmra.mxu0 %v106
    %v146 = vpop.f32.mrf.mxu0
    %v147 = vadd.f32 %v38, %v146
    %v148 = vpop.f32.mrf.mxu0
    %v149 = vadd.f32 %v38, %v148
    %150 = vmatmul.bf16.gmra.mxu0 %v109
    %v151 = vpop.f32.mrf.mxu0
    %v152 = vadd.f32 %v38, %v151
    %v153 = vpop.f32.mrf.mxu0
    %v154 = vadd.f32 %v38, %v153
    %155 = vmatmul.bf16.gmra.mxu0 %v112
    %v156 = vpop.f32.mrf.mxu0
    %v157 = vadd.f32 %v38, %v156
    %v158 = vpop.f32.mrf.mxu0
    %v159 = vadd.f32 %v38, %v158
    %160 = vmatmul.bf16.gmra.mxu0 %v115
    %v161 = vpop.f32.mrf.mxu0
    %v162 = vadd.f32 %v38, %v161
    %v163 = vpop.f32.mrf.mxu0
    %v164 = vadd.f32 %v38, %v163
    %165 = vdwg.mxu0
    %166 = vst [vmem:[#allocation2] sm:$0xff] %v127
    %167 = vst [vmem:[#allocation2 + $0x8] sm:$0xff] %v129
    %168 = vst [vmem:[#allocation2 + $0x10] sm:$0xff] %v132
    %169 = vst [vmem:[#allocation2 + $0x18] sm:$0xff] %v134
    %170 = vst [vmem:[#allocation2 + $0x20] sm:$0xff] %v137
    %171 = vst [vmem:[#allocation2 + $0x28] sm:$0xff] %v139
    %172 = vst [vmem:[#allocation2 + $0x30] sm:$0xff] %v142
    %173 = vst [vmem:[#allocation2 + $0x38] sm:$0xff] %v144
    %174 = vst [vmem:[#allocation2 + $0x40] sm:$0xff] %v147
    %175 = vst [vmem:[#allocation2 + $0x48] sm:$0xff] %v149
    %176 = vst [vmem:[#allocation2 + $0x50] sm:$0xff] %v152
    %177 = vst [vmem:[#allocation2 + $0x58] sm:$0xff] %v154
    %178 = vst [vmem:[#allocation2 + $0x60] sm:$0xff] %v157
    %179 = vst [vmem:[#allocation2 + $0x68] sm:$0xff] %v159
    %180 = vst [vmem:[#allocation2 + $0x70] sm:$0xff] %v162
    %181 = vst [vmem:[#allocation2 + $0x78] sm:$0xff] %v164
    // Predicated region
    $region14: #{tpu_custom_call.1} parent=1 // pred_check
      _
    $region15: #{tpu_custom_call.1} parent=1 // pred_check_branch
      %183 = sbr.rel (0) target = $region17
    $region16: #{tpu_custom_call.1} parent=1 // pred_region
      %185 = vsyncadd [#allocation3], 0
      %s186 = sshll.u32 [#allocation2], 4
      %s187 = int_to_ptr.vmem [resolvable:$true] %s186
      %s188 = sshll.u32 %s3, 4
      %s189 = int_to_ptr.hbm [resolvable:$true] %s188
      %194 = dma.vmem_to_hbm [thread:$0]  %s187, 2048, %s189, [#allocation3], 128, 128, 8
    $region17: #{tpu_custom_call.1} parent=1 // pred_fallthru
      _
    // Predicated region
    $region18: #{tpu_custom_call.1} parent=1 // pred_check
      _
    $region19: #{tpu_custom_call.1} parent=1 // pred_check_branch
      %196 = sbr.rel (0) target = $region21
    $region20: #{tpu_custom_call.1} parent=1 // pred_region
      %198 = dma.done [#allocation3], 2048
    $region21: #{tpu_custom_call.1} parent=1 // pred_fallthru
      _
    %199 = vsyncpa [#allocation3], 1

</llo_original>
